<compile_context>
chip_gen: v7x
topology: tpu7x:2x2x1
jax: 0.10.0
libtpu: 0.0.40
codegen_flags: <defaults>
</compile_context>

<pallas_src>
import math

import numpy as np
import jax
import jax.numpy as jnp
from jax.experimental import pallas as pl
from jax.experimental.pallas import tpu as pltpu


def _round_up(a: int, b: int) -> int:
    return (a + b - 1) // b * b


def fc_kernel(x_ref, w_ref, b_ref, o_ref):
    # x_ref: (tm, K)      bf16  rows of the flattened input
    # w_ref: (K, N_pad)   bf16  gain-folded, transposed, lane-padded weight
    # b_ref: (1, N_pad)   f32   lane-padded bias row
    # o_ref: (tm, N_pad)        lane-dense output tile
    acc = jnp.dot(x_ref[...], w_ref[...],
                  preferred_element_type=jnp.float32)     # MXU, f32 accumulate
    o_ref[...] = (acc + b_ref[...]).astype(o_ref.dtype)   # bias add in f32


def _build_fc_call(M_pad, K, N_pad, tm, out_dtype, weight_pipeline_mode):
    grid = (M_pad // tm,)
    w_kwargs = ({} if weight_pipeline_mode is None
                else {"pipeline_mode": weight_pipeline_mode})

    out_bytes = np.dtype(out_dtype).itemsize
    flops = 2 * M_pad * K * N_pad
    bytes_accessed = (M_pad * K * 2 + K * N_pad * 2 + N_pad * 4
                      + M_pad * N_pad * out_bytes)

    # VMEM budget (worst case: everything double-buffered) with headroom,
    # kept below v7x's 64 MiB physical VMEM.
    vmem_needed = (2 * tm * K * 2 + 2 * K * N_pad * 2 + 2 * N_pad * 4
                   + 2 * tm * N_pad * out_bytes)
    vmem_limit = int(min(48 * 1024 * 1024, max(8 * 1024 * 1024, 2 * vmem_needed)))

    return pl.pallas_call(
        fc_kernel,
        out_shape=jax.ShapeDtypeStruct((M_pad, N_pad), out_dtype),
        grid_spec=pltpu.PrefetchScalarGridSpec(
            num_scalar_prefetch=0,
            grid=grid,
            in_specs=[
                pl.BlockSpec((tm, K), lambda m: (m, 0)),
                pl.BlockSpec((K, N_pad), lambda m: (0, 0), **w_kwargs),
                pl.BlockSpec((1, N_pad), lambda m: (0, 0), **w_kwargs),
            ],
            out_specs=pl.BlockSpec((tm, N_pad), lambda m: (m, 0)),
        ),
        compiler_params=pltpu.CompilerParams(
            dimension_semantics=("parallel",),   # shards across TCs when grid > 1
            vmem_limit_bytes=vmem_limit,
        ),
        cost_estimate=pl.CostEstimate(
            flops=flops, transcendentals=0, bytes_accessed=bytes_accessed),
    )


def fc_forward(x, weight, bias=None, lr_mult=1.0, tm_max=256):
    """FullyConnected.forward: x @ (weight * weight_gain).T + bias."""
    out_features, in_features = weight.shape
    assert x.shape[-1] == in_features
    lead = x.shape[:-1]
    M = int(math.prod(lead))      # fuse all leading dims into MXU M
    K = in_features
    N = out_features

    # Row tile: biggest of up to 256 rows (multiple of 8 when M is small).
    tm = tm_max if M >= tm_max else _round_up(M, 8)
    M_pad = _round_up(M, tm)
    # Pad out_features to a lane-tile multiple for unmasked (lane-dense) stores.
    N_pad = _round_up(N, 128)

    # --- parameter glue (not the hot path: precompute / jit the caller in a
    # real inference loop so the gain-fold + transpose + cast happens once) ---
    gain = lr_mult / math.sqrt(in_features)
    w_t = jnp.zeros((K, N_pad), jnp.bfloat16)
    w_t = w_t.at[:, :N].set((weight * gain).T.astype(jnp.bfloat16))
    b_row = jnp.zeros((1, N_pad), jnp.float32)
    if bias is not None:
        b_row = b_row.at[0, :N].set(bias.astype(jnp.float32))

    x2 = x.reshape(M, K).astype(jnp.bfloat16)
    if M_pad != M:
        x2 = jnp.zeros((M_pad, K), jnp.bfloat16).at[:M].set(x2)

    out_dtype = x.dtype
    # TODO(synk): tile K / N_pad when a full (K, N_pad) weight no longer fits
    # the VMEM budget (only needed for very large layers).
    try:
        # Constant-index weight/bias: single-buffer to halve VMEM residency.
        call = _build_fc_call(M_pad, K, N_pad, tm, out_dtype, pl.Buffered(1))
        y = call(x2, w_t, b_row)
    except Exception:
        # Robust fallback if this jax build rejects Buffered(1) at lowering
        # time: default double-buffered weights (correct, slightly more VMEM).
        call = _build_fc_call(M_pad, K, N_pad, tm, out_dtype, None)
        y = call(x2, w_t, b_row)

    return y[:M, :N].reshape(lead + (N,))


def fc_reference(x, weight, bias=None, lr_mult=1.0):
    """Exact f32 reference mirroring the PyTorch forward."""
    gain = lr_mult / math.sqrt(weight.shape[1])
    y = x @ (weight * gain).T
    if bias is not None:
        y = y + bias
    return y


def fc_reference_bf16(x, weight, bias=None, lr_mult=1.0):
    """Reference with the same bf16 operand rounding as the kernel's MXU path."""
    gain = lr_mult / math.sqrt(weight.shape[1])
    wt = (weight * gain).T.astype(jnp.bfloat16).astype(jnp.float32)
    xb = x.astype(jnp.bfloat16).astype(jnp.float32)
    y = xb @ wt
    if bias is not None:
        y = y + bias.astype(jnp.float32)
    return y


if __name__ == "__main__":
    B, S, IN_F, OUT_F = 2, 8, 16, 32    # batch=2, seq=8, in_features=16, out_features=32

    key = jax.random.PRNGKey(0)
    kx, kw, kb = jax.random.split(key, 3)

    x = jax.random.normal(kx, (B, S, IN_F), dtype=jnp.float32)
    # FullyConnected init: weight ~ U(-1/lr_mult, 1/lr_mult), lr_mult=1.0.
    weight = jax.random.uniform(kw, (OUT_F, IN_F), dtype=jnp.float32,
                                minval=-1.0, maxval=1.0)
    # The module zero-inits bias; use a small nonzero (trained-like) bias so the
    # bias-add path is actually exercised by the check.
    bias = 0.1 * jax.random.normal(kb, (OUT_F,), dtype=jnp.float32)

    out = fc_forward(x, weight, bias, lr_mult=1.0)
    out = jax.block_until_ready(out)
    assert out.shape == (B, S, OUT_F)

    # Tight check vs a reference using the same bf16 operand rounding.
    ref_bf16 = fc_reference_bf16(x, weight, bias, lr_mult=1.0)
    assert jnp.allclose(out, ref_bf16, atol=1e-3, rtol=1e-3), "mismatch vs bf16 reference"

    # Loose check vs the exact f32 reference (bf16 MXU inputs => ~1e-3 error).
    ref_f32 = fc_reference(x, weight, bias, lr_mult=1.0)
    assert jnp.allclose(out, ref_f32, atol=5e-2, rtol=5e-2), "mismatch vs f32 reference"

    print("KERNEL_OK")
</pallas_src>

<mosaic_0001>
module attributes {stable_mosaic.version = 11 : i64} {
  func.func @fc_kernel(%arg0: i32, %arg1: memref<16x16xbf16, #tpu.memory_space<vmem>>, %arg2: memref<16x128xbf16, #tpu.memory_space<vmem>>, %arg3: memref<1x128xf32, #tpu.memory_space<vmem>>, %arg4: memref<16x128xf32, #tpu.memory_space<vmem>>) attributes {dimension_semantics = [#tpu.dimension_semantics<parallel>], iteration_bounds = array<i64: 1>, scalar_prefetch = 0 : i64, scratch_operands = 0 : i64, tpu.core_type = #tpu.core_type<tc>, window_params = [{transform_indices = @transform_0, window_bounds = array<i64: 16, 16>}, {pipeline_mode = #tpu.pipeline_mode<synchronous>, transform_indices = @transform_1, window_bounds = array<i64: 16, 128>}, {pipeline_mode = #tpu.pipeline_mode<synchronous>, transform_indices = @transform_2, window_bounds = array<i64: 1, 128>}, {transform_indices = @transform_3, window_bounds = array<i64: 16, 128>}]} {
    %c0 = arith.constant 0 : index
    %c0_0 = arith.constant 0 : index
    %0 = vector.load %arg1[%c0, %c0_0] : memref<16x16xbf16, #tpu.memory_space<vmem>>, vector<16x16xbf16>
    %c0_1 = arith.constant 0 : index
    %c0_2 = arith.constant 0 : index
    %1 = vector.load %arg2[%c0_1, %c0_2] : memref<16x128xbf16, #tpu.memory_space<vmem>>, vector<16x128xbf16>
    %cst = arith.constant dense<0.000000e+00> : vector<16x128xf32>
    %2 = tpu.matmul %0, %1, %cst {dimension_numbers = #tpu.dot_dimension_numbers<[1], [0], [0], [1], [0, 0, 1, 1], [], []>} : vector<16x16xbf16>, vector<16x128xbf16>, vector<16x128xf32> -> vector<16x128xf32>
    %c0_3 = arith.constant 0 : index
    %c0_4 = arith.constant 0 : index
    %3 = vector.load %arg3[%c0_3, %c0_4] : memref<1x128xf32, #tpu.memory_space<vmem>>, vector<1x128xf32>
    %4 = vector.broadcast %3 : vector<1x128xf32> to vector<16x128xf32>
    %5 = arith.addf %2, %4 : vector<16x128xf32>
    %c0_5 = arith.constant 0 : index
    %c0_6 = arith.constant 0 : index
    %6 = vector.load %arg4[%c0_5, %c0_6] : memref<16x128xf32, #tpu.memory_space<vmem>>, vector<16x128xf32>
    tpu.vector_store %arg4[%c0_5, %c0_6], %5 {strides = array<i32>} : memref<16x128xf32, #tpu.memory_space<vmem>>, vector<16x128xf32>,
    return
  }
  func.func @transform_0(%arg0: i32) -> (i32, i32) {
    %c0_i32 = arith.constant 0 : i32
    %c0_i32_0 = arith.constant 0 : i32
    return %arg0, %c0_i32 : i32, i32
  }
  func.func @transform_1(%arg0: i32) -> (i32, i32) {
    %c0_i32 = arith.constant 0 : i32
    %c0_i32_0 = arith.constant 0 : i32
    %c0_i32_1 = arith.constant 0 : i32
    return %c0_i32, %c0_i32_0 : i32, i32
  }
  func.func @transform_2(%arg0: i32) -> (i32, i32) {
    %c0_i32 = arith.constant 0 : i32
    %c0_i32_0 = arith.constant 0 : i32
    %c0_i32_1 = arith.constant 0 : i32
    return %c0_i32, %c0_i32_0 : i32, i32
  }
  func.func @transform_3(%arg0: i32) -> (i32, i32) {
    %c0_i32 = arith.constant 0 : i32
    %c0_i32_0 = arith.constant 0 : i32
    return %arg0, %c0_i32 : i32, i32
  }
}

module attributes {stable_mosaic.version = 11 : i64} {
  func.func @fc_kernel(%arg0: i32, %arg1: memref<16x16xbf16, #tpu.memory_space<vmem>>, %arg2: memref<16x128xbf16, #tpu.memory_space<vmem>>, %arg3: memref<1x128xf32, #tpu.memory_space<vmem>>, %arg4: memref<16x128xf32, #tpu.memory_space<vmem>>) attributes {dimension_semantics = [#tpu.dimension_semantics<parallel>], iteration_bounds = array<i64: 1>, scalar_prefetch = 0 : i64, scratch_operands = 0 : i64, tpu.core_type = #tpu.core_type<tc>, window_params = [{transform_indices = @transform_0, window_bounds = array<i64: 16, 16>}, {pipeline_mode = #tpu.pipeline_mode<synchronous>, transform_indices = @transform_1, window_bounds = array<i64: 16, 128>}, {pipeline_mode = #tpu.pipeline_mode<synchronous>, transform_indices = @transform_2, window_bounds = array<i64: 1, 128>}, {transform_indices = @transform_3, window_bounds = array<i64: 16, 128>}]} {
    %c0 = arith.constant 0 : index
    %c0_0 = arith.constant 0 : index
    %0 = vector.load %arg1[%c0, %c0_0] : memref<16x16xbf16, #tpu.memory_space<vmem>>, vector<16x16xbf16>
    %c0_1 = arith.constant 0 : index
    %c0_2 = arith.constant 0 : index
    %1 = vector.load %arg2[%c0_1, %c0_2] : memref<16x128xbf16, #tpu.memory_space<vmem>>, vector<16x128xbf16>
    %cst = arith.constant dense<0.000000e+00> : vector<16x128xf32>
    %2 = tpu.matmul %0, %1, %cst {dimension_numbers = #tpu.dot_dimension_numbers<[1], [0], [0], [1], [0, 0, 1, 1], [], []>} : vector<16x16xbf16>, vector<16x128xbf16>, vector<16x128xf32> -> vector<16x128xf32>
    %c0_3 = arith.constant 0 : index
    %c0_4 = arith.constant 0 : index
    %3 = vector.load %arg3[%c0_3, %c0_4] : memref<1x128xf32, #tpu.memory_space<vmem>>, vector<1x128xf32>
    %4 = vector.broadcast %3 : vector<1x128xf32> to vector<16x128xf32>
    %5 = arith.addf %2, %4 : vector<16x128xf32>
    %c0_5 = arith.constant 0 : index
    %c0_6 = arith.constant 0 : index
    %6 = vector.load %arg4[%c0_5, %c0_6] : memref<16x128xf32, #tpu.memory_space<vmem>>, vector<16x128xf32>
    tpu.vector_store %arg4[%c0_5, %c0_6], %5 {strides = array<i32>} : memref<16x128xf32, #tpu.memory_space<vmem>>, vector<16x128xf32>,
    return
  }
  func.func @transform_0(%arg0: i32) -> (i32, i32) {
    %c0_i32 = arith.constant 0 : i32
    %c0_i32_0 = arith.constant 0 : i32
    return %arg0, %c0_i32 : i32, i32
  }
  func.func @transform_1(%arg0: i32) -> (i32, i32) {
    %c0_i32 = arith.constant 0 : i32
    %c0_i32_0 = arith.constant 0 : i32
    %c0_i32_1 = arith.constant 0 : i32
    return %c0_i32, %c0_i32_0 : i32, i32
  }
  func.func @transform_2(%arg0: i32) -> (i32, i32) {
    %c0_i32 = arith.constant 0 : i32
    %c0_i32_0 = arith.constant 0 : i32
    %c0_i32_1 = arith.constant 0 : i32
    return %c0_i32, %c0_i32_0 : i32, i32
  }
  func.func @transform_3(%arg0: i32) -> (i32, i32) {
    %c0_i32 = arith.constant 0 : i32
    %c0_i32_0 = arith.constant 0 : i32
    return %arg0, %c0_i32 : i32, i32
  }
}

</mosaic_0001>

<llo_original>
// kernel: tpu_custom_call.1
$region0: #{tpu_custom_call.1}
  #allocation0 [shape = 'u32[]', space=smem, size = 0x4, offset = 0x4, fixed_abs, tag = 'smem constant byte address 0x4 - core index']
  #allocation1 [shape = 'u32[144,128]{1,0:T(1,128)}', space=vmem, size = 0x12000, scoped, tag = 'internal scratch']
  %s0 = inlined_call_operand.hbm [shape: bf16[16,16], index: 0, kind: input, shape index: {}]
  %s1 = inlined_call_operand.hbm [shape: bf16[16,128], index: 1, kind: input, shape index: {}]
  %s2 = inlined_call_operand.vmem [shape: f32[1,128], index: 2, kind: input, shape index: {}]
  %s3 = inlined_call_operand.hbm [shape: f32[16,128], index: 3, kind: output, shape index: {}]
  %s4 = sld [smem:[#allocation0]]
  $region30: #{tpu_custom_call.1} parent=0
    _
  %s6 = ssub.s32 1, %s4
  %s7 = scalar_select 0, %s6, %s4
  $region1: #{tpu_custom_call.1} parent=0
    #allocation2 [shape = 'u8[4096]{0}', space=vmem, size = 0x1000, scoped, tag = 'input window, operand 0, single buffered']
    #allocation3 [shape = 's32[1]{0}', space=sflag, size = 0x4, scoped, tag = 'scoped memory for tpu_custom_call.1']
    #allocation4 [shape = 's32[1]{0}', space=sflag, size = 0x4, scoped, tag = 'scoped memory for tpu_custom_call.1']
    #allocation5 [shape = 'u8[4096]{0}', space=vmem, size = 0x1000, scoped, tag = 'input window, operand 1, single buffered']
    #allocation6 [shape = 's32[1]{0}', space=sflag, size = 0x4, scoped, tag = 'scoped memory for tpu_custom_call.1']
    #allocation7 [shape = 'u8[8192]{0}', space=vmem, size = 0x2000, scoped, tag = 'output window, operand 0, single buffered']
    %8 = vsyncpa [#allocation3], 0
    %9 = vsyncpa [#allocation6], 0
    %10 = vsyncpa [#allocation4], 0
    // Predicated region
    $region2: #{tpu_custom_call.1} parent=1 // pred_check
      _
    $region3: #{tpu_custom_call.1} parent=1 // pred_check_branch
      %12 = sbr.rel (0) target = $region5
    $region4: #{tpu_custom_call.1} parent=1 // pred_region
      %s14 = ssub.s32 128, 128
      %15 = vsyncadd [#allocation3], %s14
      %s16 = sshll.u32 [#allocation2], 4
      %s17 = int_to_ptr.vmem [resolvable:$true] %s16
      %22 = dma.hbm_to_vmem [thread:$0]  %s0, 128, %s17, [#allocation3], 64, 64, 4
    $region5: #{tpu_custom_call.1} parent=1 // pred_fallthru
      _
    // Predicated region
    $region6: #{tpu_custom_call.1} parent=1 // pred_check
      _
    $region7: #{tpu_custom_call.1} parent=1 // pred_check_branch
      %24 = sbr.rel (0) target = $region9
    $region8: #{tpu_custom_call.1} parent=1 // pred_region
      %s26 = ssub.s32 128, 128
      %27 = vsyncadd [#allocation6], %s26
      %s28 = sshll.u32 [#allocation5], 4
      %s29 = int_to_ptr.vmem [resolvable:$true] %s28
      %34 = dma.hbm_to_vmem [thread:$0]  %s1, 128, %s29, [#allocation6], 64, 64, 4
    $region9: #{tpu_custom_call.1} parent=1 // pred_fallthru
      _
    // Predicated region
    $region10: #{tpu_custom_call.1} parent=1 // pred_check
      _
    $region11: #{tpu_custom_call.1} parent=1 // pred_check_branch
      %36 = sbr.rel (0) target = $region13
    $region12: #{tpu_custom_call.1} parent=1 // pred_region
      _
    $region13: #{tpu_custom_call.1} parent=1 // pred_fallthru
      _
    // Predicated region
    $region14: #{tpu_custom_call.1} parent=1 // pred_check
      _
    $region15: #{tpu_custom_call.1} parent=1 // pred_check_branch
      %38 = sbr.rel (0) target = $region17
    $region16: #{tpu_custom_call.1} parent=1 // pred_region
      %39 = dma.done [#allocation3], 128
    $region17: #{tpu_custom_call.1} parent=1 // pred_fallthru
      _
    // Predicated region
    $region18: #{tpu_custom_call.1} parent=1 // pred_check
      _
    $region19: #{tpu_custom_call.1} parent=1 // pred_check_branch
      %41 = sbr.rel (0) target = $region21
    $region20: #{tpu_custom_call.1} parent=1 // pred_region
      %42 = dma.done [#allocation6], 128
    $region21: #{tpu_custom_call.1} parent=1 // pred_fallthru
      _
    %v44 = vld [vmem:[#allocation2] sm:$0xf]
    %v45 = vld [vmem:[#allocation2 + $0x4] sm:$0xf]
    %v46 = vld [vmem:[#allocation5] sm:$0xf]
    %v47 = vld [vmem:[#allocation5 + $0x4] sm:$0xf]
    %v48 = vld [vmem:[%s2] sm:$0x1]
    %v50 = vlaneseq
    %v51 = vshrl.u32 %v50, 7
    %v52 = vsub.s32 0, %v51
    %v53 = vrot.slane %v48, %v52
    %v57 = vunpack.c.l.b16 %v44
    %v58 = vunpack.c.l.b16 %v45
    %v59 = vpack.c.b16 %v58, %v57
    %v62 = vunpack.c.l.b16 %v46
    %v63 = vunpack.c.l.b16 %v47
    %v64 = vpack.c.b16 %v63, %v62
    %vm66 = vcmask 130048
    %v68 = vsel %vm66, %v59, 0
    %70 = vmatprep.subr.bf16.mxu0 0
    %71 = vmatpush1.bf16.msra.mxu0 %v64
    %72 = vmatprep.subr.bf16.mxu0 0
    %73 = vmatpush1.bf16.msra.mxu0 0
    %74 = vmatprep.subr.bf16.mxu0 0
    %75 = vmatpush1.bf16.msra.mxu0 0
    %76 = vmatprep.subr.bf16.mxu0 0
    %77 = vmatpush1.bf16.msra.mxu0 0
    %78 = vmatprep.subr.bf16.mxu0 0
    %79 = vmatpush1.bf16.msra.mxu0 0
    %80 = vmatprep.subr.bf16.mxu0 0
    %81 = vmatpush1.bf16.msra.mxu0 0
    %82 = vmatprep.subr.bf16.mxu0 0
    %83 = vmatpush1.bf16.msra.mxu0 0
    %84 = vmatprep.subr.bf16.mxu0 0
    %85 = vmatpush1.bf16.msra.mxu0 0
    %86 = vmatprep.subr.bf16.mxu0 0
    %87 = vmatpush1.bf16.msra.mxu0 0
    %88 = vmatprep.subr.bf16.mxu0 0
    %89 = vmatpush1.bf16.msra.mxu0 0
    %90 = vmatprep.subr.bf16.mxu0 0
    %91 = vmatpush1.bf16.msra.mxu0 0
    %92 = vmatprep.subr.bf16.mxu0 0
    %93 = vmatpush1.bf16.msra.mxu0 0
    %94 = vmatprep.subr.bf16.mxu0 0
    %95 = vmatpush1.bf16.msra.mxu0 0
    %96 = vmatprep.subr.bf16.mxu0 0
    %97 = vmatpush1.bf16.msra.mxu0 0
    %98 = vmatprep.subr.bf16.mxu0 0
    %99 = vmatpush1.bf16.msra.mxu0 0
    %100 = vmatprep.subr.bf16.mxu0 0
    %101 = vmatpush1.bf16.msra.mxu0 0
    %102 = vmatprep.mubr.bf16.mxu0 0
    %103 = vmatmul.mubr.bf16.gmra.mrb[0].mxu0 %v68
    %v104 = vpop.f32.mrb[0].mxu0
    %v105 = vadd.f32 %v53, %v104
    %v106 = vpop.f32.mrb[0].mxu0
    %v107 = vpop.f32.mrb[0].mxu0
    %v108 = vadd.f32 %v53, %v107
    %v109 = vpop.f32.mrb[0].mxu0
    %110 = vdwg.mxu0
    %111 = vst [vmem:[#allocation7] sm:$0xff] %v105
    %112 = vst [vmem:[#allocation7 + $0x8] sm:$0xff] %v108
    // Predicated region
    $region22: #{tpu_custom_call.1} parent=1 // pred_check
      _
    $region23: #{tpu_custom_call.1} parent=1 // pred_check_branch
      %114 = sbr.rel (0) target = $region25
    $region24: #{tpu_custom_call.1} parent=1 // pred_region
      %s116 = ssub.s32 256, 256
      %117 = vsyncadd [#allocation4], %s116
      %s118 = sshll.u32 [#allocation7], 4
      %s119 = int_to_ptr.vmem [resolvable:$true] %s118
      %124 = dma.vmem_to_hbm [thread:$0]  %s119, 256, %s3, [#allocation4], 128, 128, 8
    $region25: #{tpu_custom_call.1} parent=1 // pred_fallthru
      _
    // Predicated region
    $region26: #{tpu_custom_call.1} parent=1 // pred_check
      _
    $region27: #{tpu_custom_call.1} parent=1 // pred_check_branch
      %126 = sbr.rel (0) target = $region29
    $region28: #{tpu_custom_call.1} parent=1 // pred_region
      %127 = dma.done [#allocation4], 256
    $region29: #{tpu_custom_call.1} parent=1 // pred_fallthru
      _
    %128 = vsyncpa [#allocation3], 1
    %129 = vsyncpa [#allocation6], 1
    %130 = vsyncpa [#allocation4], 1

// kernel: tpu_custom_call.1
$region0: #{tpu_custom_call.1}
  #allocation0 [shape = 'u32[]', space=smem, size = 0x4, offset = 0x4, fixed_abs, tag = 'smem constant byte address 0x4 - core index']
  #allocation1 [shape = 'u32[144,128]{1,0:T(1,128)}', space=vmem, size = 0x12000, scoped, tag = 'internal scratch']
  %s0 = inlined_call_operand.hbm [shape: bf16[16,16], index: 0, kind: input, shape index: {}]
  %s1 = inlined_call_operand.hbm [shape: bf16[16,128], index: 1, kind: input, shape index: {}]
  %s2 = inlined_call_operand.vmem [shape: f32[1,128], index: 2, kind: input, shape index: {}]
  %s3 = inlined_call_operand.hbm [shape: f32[16,128], index: 3, kind: output, shape index: {}]
  %s4 = sld [smem:[#allocation0]]
  $region30: #{tpu_custom_call.1} parent=0
    _
  %s6 = ssub.s32 1, %s4
  %s7 = scalar_select 0, %s6, %s4
  $region1: #{tpu_custom_call.1} parent=0
    #allocation2 [shape = 'u8[4096]{0}', space=vmem, size = 0x1000, scoped, tag = 'input window, operand 0, single buffered']
    #allocation3 [shape = 's32[1]{0}', space=sflag, size = 0x4, scoped, tag = 'scoped memory for tpu_custom_call.1']
    #allocation4 [shape = 's32[1]{0}', space=sflag, size = 0x4, scoped, tag = 'scoped memory for tpu_custom_call.1']
    #allocation5 [shape = 'u8[4096]{0}', space=vmem, size = 0x1000, scoped, tag = 'input window, operand 1, single buffered']
    #allocation6 [shape = 's32[1]{0}', space=sflag, size = 0x4, scoped, tag = 'scoped memory for tpu_custom_call.1']
    #allocation7 [shape = 'u8[8192]{0}', space=vmem, size = 0x2000, scoped, tag = 'output window, operand 0, single buffered']
    %8 = vsyncpa [#allocation3], 0
    %9 = vsyncpa [#allocation6], 0
    %10 = vsyncpa [#allocation4], 0
    // Predicated region
    $region2: #{tpu_custom_call.1} parent=1 // pred_check
      _
    $region3: #{tpu_custom_call.1} parent=1 // pred_check_branch
      %12 = sbr.rel (0) target = $region5
    $region4: #{tpu_custom_call.1} parent=1 // pred_region
      %s14 = ssub.s32 128, 128
      %15 = vsyncadd [#allocation3], %s14
      %s16 = sshll.u32 [#allocation2], 4
      %s17 = int_to_ptr.vmem [resolvable:$true] %s16
      %22 = dma.hbm_to_vmem [thread:$0]  %s0, 128, %s17, [#allocation3], 64, 64, 4
    $region5: #{tpu_custom_call.1} parent=1 // pred_fallthru
      _
    // Predicated region
    $region6: #{tpu_custom_call.1} parent=1 // pred_check
      _
    $region7: #{tpu_custom_call.1} parent=1 // pred_check_branch
      %24 = sbr.rel (0) target = $region9
    $region8: #{tpu_custom_call.1} parent=1 // pred_region
      %s26 = ssub.s32 128, 128
      %27 = vsyncadd [#allocation6], %s26
      %s28 = sshll.u32 [#allocation5], 4
      %s29 = int_to_ptr.vmem [resolvable:$true] %s28
      %34 = dma.hbm_to_vmem [thread:$0]  %s1, 128, %s29, [#allocation6], 64, 64, 4
    $region9: #{tpu_custom_call.1} parent=1 // pred_fallthru
      _
    // Predicated region
    $region10: #{tpu_custom_call.1} parent=1 // pred_check
      _
    $region11: #{tpu_custom_call.1} parent=1 // pred_check_branch
      %36 = sbr.rel (0) target = $region13
    $region12: #{tpu_custom_call.1} parent=1 // pred_region
      _
    $region13: #{tpu_custom_call.1} parent=1 // pred_fallthru
      _
    // Predicated region
    $region14: #{tpu_custom_call.1} parent=1 // pred_check
      _
    $region15: #{tpu_custom_call.1} parent=1 // pred_check_branch
      %38 = sbr.rel (0) target = $region17
    $region16: #{tpu_custom_call.1} parent=1 // pred_region
      %39 = dma.done [#allocation3], 128
    $region17: #{tpu_custom_call.1} parent=1 // pred_fallthru
      _
    // Predicated region
    $region18: #{tpu_custom_call.1} parent=1 // pred_check
      _
    $region19: #{tpu_custom_call.1} parent=1 // pred_check_branch
      %41 = sbr.rel (0) target = $region21
    $region20: #{tpu_custom_call.1} parent=1 // pred_region
      %42 = dma.done [#allocation6], 128
    $region21: #{tpu_custom_call.1} parent=1 // pred_fallthru
      _
    %v44 = vld [vmem:[#allocation2] sm:$0xf]
    %v45 = vld [vmem:[#allocation2 + $0x4] sm:$0xf]
    %v46 = vld [vmem:[#allocation5] sm:$0xf]
    %v47 = vld [vmem:[#allocation5 + $0x4] sm:$0xf]
    %v48 = vld [vmem:[%s2] sm:$0x1]
    %v50 = vlaneseq
    %v51 = vshrl.u32 %v50, 7
    %v52 = vsub.s32 0, %v51
    %v53 = vrot.slane %v48, %v52
    %v57 = vunpack.c.l.b16 %v44
    %v58 = vunpack.c.l.b16 %v45
    %v59 = vpack.c.b16 %v58, %v57
    %v62 = vunpack.c.l.b16 %v46
    %v63 = vunpack.c.l.b16 %v47
    %v64 = vpack.c.b16 %v63, %v62
    %vm66 = vcmask 130048
    %v68 = vsel %vm66, %v59, 0
    %70 = vmatprep.subr.bf16.mxu0 0
    %71 = vmatpush1.bf16.msra.mxu0 %v64
    %72 = vmatprep.subr.bf16.mxu0 0
    %73 = vmatpush1.bf16.msra.mxu0 0
    %74 = vmatprep.subr.bf16.mxu0 0
    %75 = vmatpush1.bf16.msra.mxu0 0
    %76 = vmatprep.subr.bf16.mxu0 0
    %77 = vmatpush1.bf16.msra.mxu0 0
    %78 = vmatprep.subr.bf16.mxu0 0
    %79 = vmatpush1.bf16.msra.mxu0 0
    %80 = vmatprep.subr.bf16.mxu0 0
    %81 = vmatpush1.bf16.msra.mxu0 0
    %82 = vmatprep.subr.bf16.mxu0 0
    %83 = vmatpush1.bf16.msra.mxu0 0
    %84 = vmatprep.subr.bf16.mxu0 0
    %85 = vmatpush1.bf16.msra.mxu0 0
    %86 = vmatprep.subr.bf16.mxu0 0
    %87 = vmatpush1.bf16.msra.mxu0 0
    %88 = vmatprep.subr.bf16.mxu0 0
    %89 = vmatpush1.bf16.msra.mxu0 0
    %90 = vmatprep.subr.bf16.mxu0 0
    %91 = vmatpush1.bf16.msra.mxu0 0
    %92 = vmatprep.subr.bf16.mxu0 0
    %93 = vmatpush1.bf16.msra.mxu0 0
    %94 = vmatprep.subr.bf16.mxu0 0
    %95 = vmatpush1.bf16.msra.mxu0 0
    %96 = vmatprep.subr.bf16.mxu0 0
    %97 = vmatpush1.bf16.msra.mxu0 0
    %98 = vmatprep.subr.bf16.mxu0 0
    %99 = vmatpush1.bf16.msra.mxu0 0
    %100 = vmatprep.subr.bf16.mxu0 0
    %101 = vmatpush1.bf16.msra.mxu0 0
    %102 = vmatprep.mubr.bf16.mxu0 0
    %103 = vmatmul.mubr.bf16.gmra.mrb[0].mxu0 %v68
    %v104 = vpop.f32.mrb[0].mxu0
    %v105 = vadd.f32 %v53, %v104
    %v106 = vpop.f32.mrb[0].mxu0
    %v107 = vpop.f32.mrb[0].mxu0
    %v108 = vadd.f32 %v53, %v107
    %v109 = vpop.f32.mrb[0].mxu0
    %110 = vdwg.mxu0
    %111 = vst [vmem:[#allocation7] sm:$0xff] %v105
    %112 = vst [vmem:[#allocation7 + $0x8] sm:$0xff] %v108
    // Predicated region
    $region22: #{tpu_custom_call.1} parent=1 // pred_check
      _
    $region23: #{tpu_custom_call.1} parent=1 // pred_check_branch
      %114 = sbr.rel (0) target = $region25
    $region24: #{tpu_custom_call.1} parent=1 // pred_region
      %s116 = ssub.s32 256, 256
      %117 = vsyncadd [#allocation4], %s116
      %s118 = sshll.u32 [#allocation7], 4
      %s119 = int_to_ptr.vmem [resolvable:$true] %s118
      %124 = dma.vmem_to_hbm [thread:$0]  %s119, 256, %s3, [#allocation4], 128, 128, 8
    $region25: #{tpu_custom_call.1} parent=1 // pred_fallthru
      _
    // Predicated region
    $region26: #{tpu_custom_call.1} parent=1 // pred_check
      _
    $region27: #{tpu_custom_call.1} parent=1 // pred_check_branch
      %126 = sbr.rel (0) target = $region29
    $region28: #{tpu_custom_call.1} parent=1 // pred_region
      %127 = dma.done [#allocation4], 256
    $region29: #{tpu_custom_call.1} parent=1 // pred_fallthru
      _
    %128 = vsyncpa [#allocation3], 1
    %129 = vsyncpa [#allocation6], 1
    %130 = vsyncpa [#allocation4], 1

</llo_original>
